<compile_context>
chip_gen: v5e
topology: v5e:2x2
jax: 0.10.0
libtpu: 0.0.40
codegen_flags: <defaults>
</compile_context>

<pallas_src>
import jax
import jax.numpy as jnp
from jax.experimental import pallas as pl
from jax.experimental.pallas import tpu as pltpu


# --------------------------------------------------------------------------- #
# Kernels
# --------------------------------------------------------------------------- #
def _make_vw_kernel(compute_dtype):
    """Grid point (j, i): VW[i, j] block = V_i @ W_j  (f32 MXU accumulation)."""
    def _vw_kernel(v_ref, w_ref, vw_ref):
        v = v_ref[...]
        w = w_ref[...]
        if v.dtype != compute_dtype:
            v = v.astype(compute_dtype)
        if w.dtype != compute_dtype:
            # In-kernel block cast: costs VPU slots (plenty of slack in this
            # mem-bound kernel) but never an extra HBM pass over W.
            w = w.astype(compute_dtype)
        vw_ref[...] = jnp.dot(
            v, w, preferred_element_type=jnp.float32
        ).astype(vw_ref.dtype)
    return _vw_kernel


def _make_accum_kernel(zero_accum):
    """acc_out = accum_sum - V @ bias  (bias dot on the MXU, always f32)."""
    if zero_accum:
        def _accum_kernel(v_ref, b_ref, out_ref):
            bdot = jnp.dot(v_ref[...].astype(jnp.float32), b_ref[...],
                           preferred_element_type=jnp.float32)
            out_ref[...] = (-bdot).astype(out_ref.dtype)
    else:
        def _accum_kernel(v_ref, b_ref, acc_ref, out_ref):
            bdot = jnp.dot(v_ref[...].astype(jnp.float32), b_ref[...],
                           preferred_element_type=jnp.float32)
            out_ref[...] = (acc_ref[...] - bdot).astype(out_ref.dtype)
    return _accum_kernel


# --------------------------------------------------------------------------- #
# Wrapper
# --------------------------------------------------------------------------- #
def _vmem_caps():
    """(physical VMEM bytes, usable budget ~= 3/4 of physical)."""
    cap = 64 * 1024 * 1024  # conservative fallback (v7x per-TC VMEM)
    try:
        info = pltpu.get_tpu_info()
        c = int(getattr(info, "vmem_capacity_bytes", 0) or 0)
        if c > 0:
            cap = c
    except Exception:
        pass
    return cap, (cap * 3) // 4


def l1_sl_forward(tuple_args, weight, bias, *, set_zero_accum=False,
                  batch_tile=None, din_tile=None, use_bf16=False,
                  vw_dtype=None):
    """Pallas implementation of L1_SL.forward.

    tuple_args = (V_next (B, Dout), V_W_next (ignored), accum_sum (B,))
    weight: (Dout, Din) transposed-layer weight; bias: (Dout,).
    Returns (V_next, V_next @ weight, accum_sum - V_next @ bias).
    """
    V_next, _V_W_next, accum_sum = tuple_args
    B, Dout = V_next.shape
    Dout_w, Din = weight.shape
    assert Dout == Dout_w
    assert accum_sum.shape == (B,)
    assert bias.shape == (Dout,)

    vw_dtype = jnp.dtype(V_next.dtype) if vw_dtype is None else jnp.dtype(vw_dtype)
    compute_dtype = (jnp.dtype(jnp.bfloat16) if use_bf16
                     else jnp.promote_types(V_next.dtype, weight.dtype))

    # V is tiny (B x Dout) -> the wrapper cast is cheap.  W is NEVER cast in
    # the wrapper; pass an already-bf16 weight to halve the dominant HBM read.
    v_in = V_next.astype(compute_dtype)
    w_in = weight

    elem_v = jnp.dtype(compute_dtype).itemsize
    elem_w = jnp.dtype(w_in.dtype).itemsize
    elem_vw = vw_dtype.itemsize

    cap, budget = _vmem_caps()

    # ---- batch tile: keep nb == 1 (single W pass) unless B is very large ----
    if batch_tile is not None:
        tb = int(batch_tile)
    else:
        tb = B if B <= 1024 else 512
    assert tb == B or tb % 8 == 0, "batch tile must be a multiple of 8 or the full batch"

    # ---- Din tile derived from the VMEM budget ------------------------------
    def step_bytes(tn_):
        return (2 * Dout * tn_ * elem_w        # double-buffered W column block
                + 2 * tb * tn_ * elem_vw       # double-buffered VW output block
                + 2 * tb * Dout * elem_v)      # (resident / re-fetched) V tile

    if din_tile is not None:
        tn = int(din_tile)
    else:
        if Din <= 128 or step_bytes(Din) <= budget:
            tn = Din
        else:
            per_tn = 2 * (Dout * elem_w + tb * elem_vw)
            avail = max(budget - 2 * tb * Dout * elem_v, 0)
            tn = (avail // per_tn) // 128 * 128
            tn = int(min(max(tn, 128), Din))
    assert tn == Din or tn % 128 == 0, "Din tile must be a multiple of 128 or the full Din"
    # TODO(synk): very wide layers (Dout >= ~8K f32 on v7x) would need a K
    # (Dout) grid axis + f32 VMEM accumulator scratch to keep the (Dout, tn)
    # W block under the 64 MiB budget; not needed for these solver shapes.

    nj = pl.cdiv(Din, tn)   # Din tiles  (OUTER grid axis, megacore-parallel)
    nb = pl.cdiv(B, tb)     # batch tiles (INNER grid axis, W stays resident)

    vmem_limit = int(min(cap, max(step_bytes(tn) + (4 << 20), 32 << 20)))
    compiler_params = pltpu.CompilerParams(
        dimension_semantics=("parallel", "arbitrary"),
        vmem_limit_bytes=vmem_limit,
    )
    cost = pl.CostEstimate(
        flops=2 * B * Dout * Din,
        transcendentals=0,
        bytes_accessed=(elem_w * Dout * Din          # W read once total
                        + elem_v * nj * B * Dout     # small V tile per j step
                        + elem_vw * B * Din),        # VW write
    )

    # ---- main kernel: VW = V @ W --------------------------------------------
    vw = pl.pallas_call(
        _make_vw_kernel(compute_dtype),
        grid=(nj, nb),
        in_specs=[
            pl.BlockSpec((tb, Dout), lambda j, i: (i, 0)),   # tiny V tile
            pl.BlockSpec((Dout, tn), lambda j, i: (0, j)),   # W block, resident over i
        ],
        out_specs=pl.BlockSpec((tb, tn), lambda j, i: (i, j)),  # lane-dense VW
        out_shape=jax.ShapeDtypeStruct((B, Din), vw_dtype),
        compiler_params=compiler_params,
        cost_estimate=cost,
    )(v_in, w_in)

    # ---- tiny accum kernel: acc_out = accum_sum - V @ bias ------------------
    # Uses the ORIGINAL V (not the bf16 cast) so the bias/accum path is exact.
    b_col = bias.reshape(Dout, 1).astype(jnp.float32)
    ta = B if B <= 2048 else 512
    na = pl.cdiv(B, ta)
    acc_in_specs = [
        pl.BlockSpec((ta, Dout), lambda i: (i, 0)),
        pl.BlockSpec((Dout, 1), lambda i: (0, 0)),
    ]
    acc_args = (V_next, b_col)
    if not set_zero_accum:
        acc_in_specs.append(pl.BlockSpec((ta, 1), lambda i: (i, 0)))
        acc_args = acc_args + (accum_sum.reshape(B, 1),)

    acc_out = pl.pallas_call(
        _make_accum_kernel(set_zero_accum),
        grid=(na,),
        in_specs=acc_in_specs,
        out_specs=pl.BlockSpec((ta, 1), lambda i: (i, 0)),
        out_shape=jax.ShapeDtypeStruct((B, 1), accum_sum.dtype),
        compiler_params=pltpu.CompilerParams(
            dimension_semantics=("parallel",),
            vmem_limit_bytes=32 * 1024 * 1024,
        ),
    )(*acc_args)

    # V is passed through unchanged (pure identity; no kernel needed).
    return V_next, vw, acc_out.reshape(B)


# --------------------------------------------------------------------------- #
# Self-test
# --------------------------------------------------------------------------- #
if __name__ == "__main__":
    key = jax.random.PRNGKey(0)
    k1, k2, k3, k4, k5 = jax.random.split(key, 5)

    B, Dout, Din = 16, 64, 640
    weight = jax.random.normal(k1, (Dout, Din), dtype=jnp.float32) * 0.1
    bias = jax.random.normal(k2, (Dout,), dtype=jnp.float32) * 0.1
    V_next = jax.random.normal(k3, (B, Dout), dtype=jnp.float32)
    V_W_next = jax.random.normal(k4, (B, Din), dtype=jnp.float32)  # discarded by the module
    accum_sum = jax.random.normal(k5, (B,), dtype=jnp.float32)

    vw_ref = V_next @ weight
    acc_ref = accum_sum - V_next @ bias

    # 1) default tiles: nb == 1, tn == Din (single W pass)
    V_out, VW_out, acc_out = l1_sl_forward((V_next, V_W_next, accum_sum), weight, bias)
    jax.block_until_ready((V_out, VW_out, acc_out))
    assert jnp.allclose(V_out, V_next)
    assert jnp.allclose(VW_out, vw_ref, atol=1e-5, rtol=1e-5)
    assert jnp.allclose(acc_out, acc_ref, atol=1e-5, rtol=1e-5)

    # 2) forced multi-tile grid (Din outer / batch inner) + set_zero_accum
    _, VW_t, acc_zero = l1_sl_forward(
        (V_next, V_W_next, accum_sum), weight, bias,
        set_zero_accum=True, batch_tile=8, din_tile=128)
    jax.block_until_ready((VW_t, acc_zero))
    assert jnp.allclose(VW_t, vw_ref, atol=1e-5, rtol=1e-5)
    assert jnp.allclose(acc_zero, -(V_next @ bias), atol=1e-5, rtol=1e-5)

    # 3) partial edge blocks (tiles that do not divide B / Din)
    B2, Dout2, Din2 = 20, 32, 160
    w2 = jax.random.normal(k1, (Dout2, Din2), dtype=jnp.float32) * 0.1
    b2 = jax.random.normal(k2, (Dout2,), dtype=jnp.float32) * 0.1
    V2 = jax.random.normal(k3, (B2, Dout2), dtype=jnp.float32)
    acc2 = jax.random.normal(k5, (B2,), dtype=jnp.float32)
    _, VW2, accO2 = l1_sl_forward((V2, None, acc2), w2, b2,
                                  batch_tile=16, din_tile=128)
    jax.block_until_ready((VW2, accO2))
    assert jnp.allclose(VW2, V2 @ w2, atol=1e-5, rtol=1e-5)
    assert jnp.allclose(accO2, acc2 - V2 @ b2, atol=1e-5, rtol=1e-5)

    # 4) bf16 MXU path (W stays f32 in HBM, cast per-block in-kernel;
    #    bias/accum path uses original f32 V, so it stays exact)
    _, VW_bf, acc_bf = l1_sl_forward(
        (V_next, V_W_next, accum_sum), weight, bias,
        din_tile=128, use_bf16=True)
    jax.block_until_ready((VW_bf, acc_bf))
    assert jnp.allclose(VW_bf, vw_ref, atol=5e-2, rtol=5e-2)
    assert jnp.allclose(acc_bf, acc_ref, atol=1e-5, rtol=1e-5)

    print("KERNEL_OK")
</pallas_src>

<mosaic_0001>
module attributes {stable_mosaic.version = 11 : i64} {
  func.func @_vw_kernel(%arg0: i32, %arg1: i32, %arg2: memref<16x64xf32, #tpu.memory_space<vmem>>, %arg3: memref<64x640xf32, #tpu.memory_space<vmem>>, %arg4: memref<16x640xf32, #tpu.memory_space<vmem>>) attributes {dimension_semantics = [#tpu.dimension_semantics<parallel>, #tpu.dimension_semantics<arbitrary>], iteration_bounds = array<i64: 1, 1>, scalar_prefetch = 0 : i64, scratch_operands = 0 : i64, tpu.core_type = #tpu.core_type<tc>, window_params = [{transform_indices = @transform_0, window_bounds = array<i64: 16, 64>}, {transform_indices = @transform_1, window_bounds = array<i64: 64, 640>}, {transform_indices = @transform_2, window_bounds = array<i64: 16, 640>}]} {
    %c0 = arith.constant 0 : index
    %c0_0 = arith.constant 0 : index
    %0 = vector.load %arg2[%c0, %c0_0] : memref<16x64xf32, #tpu.memory_space<vmem>>, vector<16x64xf32>
    %c0_1 = arith.constant 0 : index
    %c0_2 = arith.constant 0 : index
    %1 = vector.load %arg3[%c0_1, %c0_2] : memref<64x640xf32, #tpu.memory_space<vmem>>, vector<64x640xf32>
    %cst = arith.constant dense<0.000000e+00> : vector<16x640xf32>
    %2 = tpu.matmul %0, %1, %cst {dimension_numbers = #tpu.dot_dimension_numbers<[1], [0], [0], [1], [0, 0, 1, 1], [], []>} : vector<16x64xf32>, vector<64x640xf32>, vector<16x640xf32> -> vector<16x640xf32>
    %c0_3 = arith.constant 0 : index
    %c0_4 = arith.constant 0 : index
    %3 = vector.load %arg4[%c0_3, %c0_4] : memref<16x640xf32, #tpu.memory_space<vmem>>, vector<16x640xf32>
    tpu.vector_store %arg4[%c0_3, %c0_4], %2 {strides = array<i32>} : memref<16x640xf32, #tpu.memory_space<vmem>>, vector<16x640xf32>,
    return
  }
  func.func @transform_0(%arg0: i32, %arg1: i32) -> (i32, i32) {
    %c0_i32 = arith.constant 0 : i32
    %c0_i32_0 = arith.constant 0 : i32
    return %arg1, %c0_i32 : i32, i32
  }
  func.func @transform_1(%arg0: i32, %arg1: i32) -> (i32, i32) {
    %c0_i32 = arith.constant 0 : i32
    %c0_i32_0 = arith.constant 0 : i32
    return %c0_i32, %arg0 : i32, i32
  }
  func.func @transform_2(%arg0: i32, %arg1: i32) -> (i32, i32) {
    %c0_i32 = arith.constant 0 : i32
    return %arg1, %arg0 : i32, i32
  }
}

</mosaic_0001>

<llo_original>
// kernel: tpu_custom_call.1
$region0: #{tpu_custom_call.1}
  #allocation0 [shape = 'u32[]', space=smem, size = 0x4, offset = 0x4, fixed_abs, tag = 'smem constant byte address 0x4 - core index']
  #allocation1 [shape = 'u32[72,128]{1,0:T(1,128)}', space=vmem, size = 0x9000, scoped, tag = 'internal scratch']
  %s0 = inlined_call_operand.hbm [shape: f32[16,64], index: 0, kind: input, shape index: {}]
  %s1 = inlined_call_operand.hbm [shape: f32[64,640], index: 1, kind: input, shape index: {}]
  %s2 = inlined_call_operand.hbm [shape: f32[16,640], index: 2, kind: output, shape index: {}]
  %s3 = sld [smem:[#allocation0]]
  $region26: #{tpu_custom_call.1} parent=0
    _
  %s5 = ssub.s32 1, %s3
  %s6 = scalar_select 0, %s5, %s3
  $region1: #{tpu_custom_call.1} parent=0
    #allocation2 [shape = 'u8[8192]{0}', space=vmem, size = 0x2000, scoped, tag = 'input window, operand 0, single buffered']
    #allocation3 [shape = 's32[1]{0}', space=sflag, size = 0x4, scoped, tag = 'scoped memory for tpu_custom_call.1']
    #allocation4 [shape = 's32[1]{0}', space=sflag, size = 0x4, scoped, tag = 'scoped memory for tpu_custom_call.1']
    #allocation5 [shape = 'u8[163840]{0}', space=vmem, size = 0x28000, scoped, tag = 'input window, operand 1, single buffered']
    #allocation6 [shape = 's32[1]{0}', space=sflag, size = 0x4, scoped, tag = 'scoped memory for tpu_custom_call.1']
    #allocation7 [shape = 'u8[40960]{0}', space=vmem, size = 0xa000, scoped, tag = 'output window, operand 0, single buffered']
    %7 = vsyncpa [#allocation3], 0
    %8 = vsyncpa [#allocation6], 0
    %9 = vsyncpa [#allocation4], 0
    // Predicated region
    $region2: #{tpu_custom_call.1} parent=1 // pred_check
      _
    $region3: #{tpu_custom_call.1} parent=1 // pred_check_branch
      %11 = sbr.rel (0) target = $region5
    $region4: #{tpu_custom_call.1} parent=1 // pred_region
      %13 = vsyncadd [#allocation3], 0
      %s14 = sshll.u32 %s0, 4
      %s15 = int_to_ptr.hbm [resolvable:$true] %s14
      %s16 = sshll.u32 [#allocation2], 4
      %s17 = int_to_ptr.vmem [resolvable:$true] %s16
      %22 = dma.hbm_to_vmem [thread:$0]  %s15, 256, %s17, [#allocation3], 128, 128, 8
    $region5: #{tpu_custom_call.1} parent=1 // pred_fallthru
      _
    // Predicated region
    $region6: #{tpu_custom_call.1} parent=1 // pred_check
      _
    $region7: #{tpu_custom_call.1} parent=1 // pred_check_branch
      %24 = sbr.rel (0) target = $region9
    $region8: #{tpu_custom_call.1} parent=1 // pred_region
      %26 = vsyncadd [#allocation6], 0
      %s27 = sshll.u32 %s1, 4
      %s28 = int_to_ptr.hbm [resolvable:$true] %s27
      %s29 = sshll.u32 [#allocation5], 4
      %s30 = int_to_ptr.vmem [resolvable:$true] %s29
      %35 = dma.hbm_to_vmem [thread:$0]  %s28, 5120, %s30, [#allocation6], 640, 640, 40
    $region9: #{tpu_custom_call.1} parent=1 // pred_fallthru
      _
    // Predicated region
    $region10: #{tpu_custom_call.1} parent=1 // pred_check
      _
    $region11: #{tpu_custom_call.1} parent=1 // pred_check_branch
      %37 = sbr.rel (0) target = $region13
    $region12: #{tpu_custom_call.1} parent=1 // pred_region
      %39 = dma.done [#allocation3], 256
    $region13: #{tpu_custom_call.1} parent=1 // pred_fallthru
      _
    // Predicated region
    $region14: #{tpu_custom_call.1} parent=1 // pred_check
      _
    $region15: #{tpu_custom_call.1} parent=1 // pred_check_branch
      %41 = sbr.rel (0) target = $region17
    $region16: #{tpu_custom_call.1} parent=1 // pred_region
      %43 = dma.done [#allocation6], 5120
    $region17: #{tpu_custom_call.1} parent=1 // pred_fallthru
      _
    %v44 = vld [vmem:[#allocation2] sm:$0xff]
    %v45 = vld [vmem:[#allocation2 + $0x8] sm:$0xff]
    %v46 = vld [vmem:[#allocation5] sm:$0xff]
    %v47 = vld [vmem:[#allocation5 + $0x8] sm:$0xff]
    %v48 = vld [vmem:[#allocation5 + $0x10] sm:$0xff]
    %v49 = vld [vmem:[#allocation5 + $0x18] sm:$0xff]
    %v50 = vld [vmem:[#allocation5 + $0x20] sm:$0xff]
    %v51 = vld [vmem:[#allocation5 + $0x28] sm:$0xff]
    %v52 = vld [vmem:[#allocation5 + $0x30] sm:$0xff]
    %v53 = vld [vmem:[#allocation5 + $0x38] sm:$0xff]
    %v54 = vld [vmem:[#allocation5 + $0x40] sm:$0xff]
    %v55 = vld [vmem:[#allocation5 + $0x48] sm:$0xff]
    %v56 = vld [vmem:[#allocation5 + $0x50] sm:$0xff]
    %v57 = vld [vmem:[#allocation5 + $0x58] sm:$0xff]
    %v58 = vld [vmem:[#allocation5 + $0x60] sm:$0xff]
    %v59 = vld [vmem:[#allocation5 + $0x68] sm:$0xff]
    %v60 = vld [vmem:[#allocation5 + $0x70] sm:$0xff]
    %v61 = vld [vmem:[#allocation5 + $0x78] sm:$0xff]
    %v62 = vld [vmem:[#allocation5 + $0x80] sm:$0xff]
    %v63 = vld [vmem:[#allocation5 + $0x88] sm:$0xff]
    %v64 = vld [vmem:[#allocation5 + $0x90] sm:$0xff]
    %v65 = vld [vmem:[#allocation5 + $0x98] sm:$0xff]
    %v66 = vld [vmem:[#allocation5 + $0xa0] sm:$0xff]
    %v67 = vld [vmem:[#allocation5 + $0xa8] sm:$0xff]
    %v68 = vld [vmem:[#allocation5 + $0xb0] sm:$0xff]
    %v69 = vld [vmem:[#allocation5 + $0xb8] sm:$0xff]
    %v70 = vld [vmem:[#allocation5 + $0xc0] sm:$0xff]
    %v71 = vld [vmem:[#allocation5 + $0xc8] sm:$0xff]
    %v72 = vld [vmem:[#allocation5 + $0xd0] sm:$0xff]
    %v73 = vld [vmem:[#allocation5 + $0xd8] sm:$0xff]
    %v74 = vld [vmem:[#allocation5 + $0xe0] sm:$0xff]
    %v75 = vld [vmem:[#allocation5 + $0xe8] sm:$0xff]
    %v76 = vld [vmem:[#allocation5 + $0xf0] sm:$0xff]
    %v77 = vld [vmem:[#allocation5 + $0xf8] sm:$0xff]
    %v78 = vld [vmem:[#allocation5 + $0x100] sm:$0xff]
    %v79 = vld [vmem:[#allocation5 + $0x108] sm:$0xff]
    %v80 = vld [vmem:[#allocation5 + $0x110] sm:$0xff]
    %v81 = vld [vmem:[#allocation5 + $0x118] sm:$0xff]
    %v82 = vld [vmem:[#allocation5 + $0x120] sm:$0xff]
    %v83 = vld [vmem:[#allocation5 + $0x128] sm:$0xff]
    %v84 = vld [vmem:[#allocation5 + $0x130] sm:$0xff]
    %v85 = vld [vmem:[#allocation5 + $0x138] sm:$0xff]
    %vm86 = vcmask 523264
    %v88 = vsel %vm86, %v44, 0
    %v91 = vsel %vm86, %v45, 0
    %93 = vmatpush.msra.mxu0 0.0
    %94 = vmatpush.msra.mxu0 0.0
    %95 = vmatpush.msra.mxu0 0.0
    %96 = vmatpush.msra.mxu0 0.0
    %97 = vmatpush.msra.mxu0 0.0
    %98 = vmatpush.msra.mxu0 0.0
    %99 = vmatpush.msra.mxu0 0.0
    %100 = vmatpush.msra.mxu0 0.0
    %101 = vmatpush.msra.mxu0 %v81
    %102 = vmatpush.msra.mxu0 %v76
    %103 = vmatpush.msra.mxu0 %v71
    %104 = vmatpush.msra.mxu0 %v66
    %105 = vmatpush.msra.mxu0 %v61
    %106 = vmatpush.msra.mxu0 %v56
    %107 = vmatpush.msra.mxu0 %v51
    %108 = vmatpush.msra.mxu0 %v46
    %109 = vmatmul.f32.gmra.mxu0 %v88
    %v110 = vpop.f32.mrf.mxu0
    %v111 = vadd.f32 0.0, %v110
    %112 = vmatmul.f32.gmra.mxu0 %v91
    %v113 = vpop.f32.mrf.mxu0
    %v114 = vadd.f32 0.0, %v113
    %115 = vdwg.mxu0
    %116 = vmatpush.msra.mxu0 0.0
    %117 = vmatpush.msra.mxu0 0.0
    %118 = vmatpush.msra.mxu0 0.0
    %119 = vmatpush.msra.mxu0 0.0
    %120 = vmatpush.msra.mxu0 0.0
    %121 = vmatpush.msra.mxu0 0.0
    %122 = vmatpush.msra.mxu0 0.0
    %123 = vmatpush.msra.mxu0 0.0
    %124 = vmatpush.msra.mxu0 %v82
    %125 = vmatpush.msra.mxu0 %v77
    %126 = vmatpush.msra.mxu0 %v72
    %127 = vmatpush.msra.mxu0 %v67
    %128 = vmatpush.msra.mxu0 %v62
    %129 = vmatpush.msra.mxu0 %v57
    %130 = vmatpush.msra.mxu0 %v52
    %131 = vmatpush.msra.mxu0 %v47
    %132 = vmatmul.f32.gmra.mxu0 %v88
    %v133 = vpop.f32.mrf.mxu0
    %v134 = vadd.f32 0.0, %v133
    %135 = vmatmul.f32.gmra.mxu0 %v91
    %v136 = vpop.f32.mrf.mxu0
    %v137 = vadd.f32 0.0, %v136
    %138 = vdwg.mxu0
    %139 = vmatpush.msra.mxu0 0.0
    %140 = vmatpush.msra.mxu0 0.0
    %141 = vmatpush.msra.mxu0 0.0
    %142 = vmatpush.msra.mxu0 0.0
    %143 = vmatpush.msra.mxu0 0.0
    %144 = vmatpush.msra.mxu0 0.0
    %145 = vmatpush.msra.mxu0 0.0
    %146 = vmatpush.msra.mxu0 0.0
    %147 = vmatpush.msra.mxu0 %v83
    %148 = vmatpush.msra.mxu0 %v78
    %149 = vmatpush.msra.mxu0 %v73
    %150 = vmatpush.msra.mxu0 %v68
    %151 = vmatpush.msra.mxu0 %v63
    %152 = vmatpush.msra.mxu0 %v58
    %153 = vmatpush.msra.mxu0 %v53
    %154 = vmatpush.msra.mxu0 %v48
    %155 = vmatmul.f32.gmra.mxu0 %v88
    %v156 = vpop.f32.mrf.mxu0
    %v157 = vadd.f32 0.0, %v156
    %158 = vmatmul.f32.gmra.mxu0 %v91
    %v159 = vpop.f32.mrf.mxu0
    %v160 = vadd.f32 0.0, %v159
    %161 = vdwg.mxu0
    %162 = vmatpush.msra.mxu0 0.0
    %163 = vmatpush.msra.mxu0 0.0
    %164 = vmatpush.msra.mxu0 0.0
    %165 = vmatpush.msra.mxu0 0.0
    %166 = vmatpush.msra.mxu0 0.0
    %167 = vmatpush.msra.mxu0 0.0
    %168 = vmatpush.msra.mxu0 0.0
    %169 = vmatpush.msra.mxu0 0.0
    %170 = vmatpush.msra.mxu0 %v84
    %171 = vmatpush.msra.mxu0 %v79
    %172 = vmatpush.msra.mxu0 %v74
    %173 = vmatpush.msra.mxu0 %v69
    %174 = vmatpush.msra.mxu0 %v64
    %175 = vmatpush.msra.mxu0 %v59
    %176 = vmatpush.msra.mxu0 %v54
    %177 = vmatpush.msra.mxu0 %v49
    %178 = vmatmul.f32.gmra.mxu0 %v88
    %v179 = vpop.f32.mrf.mxu0
    %v180 = vadd.f32 0.0, %v179
    %181 = vmatmul.f32.gmra.mxu0 %v91
    %v182 = vpop.f32.mrf.mxu0
    %v183 = vadd.f32 0.0, %v182
    %184 = vdwg.mxu0
    %185 = vmatpush.msra.mxu0 0.0
    %186 = vmatpush.msra.mxu0 0.0
    %187 = vmatpush.msra.mxu0 0.0
    %188 = vmatpush.msra.mxu0 0.0
    %189 = vmatpush.msra.mxu0 0.0
    %190 = vmatpush.msra.mxu0 0.0
    %191 = vmatpush.msra.mxu0 0.0
    %192 = vmatpush.msra.mxu0 0.0
    %193 = vmatpush.msra.mxu0 %v85
    %194 = vmatpush.msra.mxu0 %v80
    %195 = vmatpush.msra.mxu0 %v75
    %196 = vmatpush.msra.mxu0 %v70
    %197 = vmatpush.msra.mxu0 %v65
    %198 = vmatpush.msra.mxu0 %v60
    %199 = vmatpush.msra.mxu0 %v55
    %200 = vmatpush.msra.mxu0 %v50
    %201 = vmatmul.f32.gmra.mxu0 %v88
    %v202 = vpop.f32.mrf.mxu0
    %v203 = vadd.f32 0.0, %v202
    %204 = vmatmul.f32.gmra.mxu0 %v91
    %v205 = vpop.f32.mrf.mxu0
    %v206 = vadd.f32 0.0, %v205
    %207 = vdwg.mxu0
    %208 = vst [vmem:[#allocation7] sm:$0xff] %v111
    %209 = vst [vmem:[#allocation7 + $0x8] sm:$0xff] %v134
    %210 = vst [vmem:[#allocation7 + $0x10] sm:$0xff] %v157
    %211 = vst [vmem:[#allocation7 + $0x18] sm:$0xff] %v180
    %212 = vst [vmem:[#allocation7 + $0x20] sm:$0xff] %v203
    %213 = vst [vmem:[#allocation7 + $0x28] sm:$0xff] %v114
    %214 = vst [vmem:[#allocation7 + $0x30] sm:$0xff] %v137
    %215 = vst [vmem:[#allocation7 + $0x38] sm:$0xff] %v160
    %216 = vst [vmem:[#allocation7 + $0x40] sm:$0xff] %v183
    %217 = vst [vmem:[#allocation7 + $0x48] sm:$0xff] %v206
    // Predicated region
    $region18: #{tpu_custom_call.1} parent=1 // pred_check
      _
    $region19: #{tpu_custom_call.1} parent=1 // pred_check_branch
      %219 = sbr.rel (0) target = $region21
    $region20: #{tpu_custom_call.1} parent=1 // pred_region
      %221 = vsyncadd [#allocation4], 0
      %s222 = sshll.u32 [#allocation7], 4
      %s223 = int_to_ptr.vmem [resolvable:$true] %s222
      %s224 = sshll.u32 %s2, 4
      %s225 = int_to_ptr.hbm [resolvable:$true] %s224
      %230 = dma.vmem_to_hbm [thread:$0]  %s223, 1280, %s225, [#allocation4], 640, 640, 40
    $region21: #{tpu_custom_call.1} parent=1 // pred_fallthru
      _
    // Predicated region
    $region22: #{tpu_custom_call.1} parent=1 // pred_check
      _
    $region23: #{tpu_custom_call.1} parent=1 // pred_check_branch
      %232 = sbr.rel (0) target = $region25
    $region24: #{tpu_custom_call.1} parent=1 // pred_region
      %234 = dma.done [#allocation4], 1280
    $region25: #{tpu_custom_call.1} parent=1 // pred_fallthru
      _
    %235 = vsyncpa [#allocation3], 1
    %236 = vsyncpa [#allocation6], 1
    %237 = vsyncpa [#allocation4], 1

</llo_original>
